<compile_context>
chip_gen: v7x
topology: tpu7x:2x2x1
jax: 0.10.0
libtpu: 0.0.40
codegen_flags: <defaults>
</compile_context>

<pallas_src>
import jax
import jax.numpy as jnp
from jax.experimental import pallas as pl
from jax.experimental.pallas import tpu as pltpu

HIDDEN = 100          # logical hidden size (matches nn.Linear(..., 100))
HIDDEN_PAD = 128      # lane-aligned padded hidden size
OUT = 2               # domain logits


def _round_up(n, m):
    return ((n + m - 1) // m) * m


def _cdiv(a, b):
    return -(-a // b)


def _mlp_kernel(x_ref, y_ref, w1x_ref, w1y_ref, b1_ref, w2_ref, b2_ref, out_ref):
    # x_ref  : (TB, Dx)   bf16      Dx = input_dim
    # y_ref  : (TB, Dy)   bf16      Dy = num_classes
    # w1x_ref: (Dx, 128)  bf16
    # w1y_ref: (Dy, 128)  bf16
    # b1_ref : (1, 128)   f32
    # w2_ref : (128, 2)   f32
    # b2_ref : (1, 2)     f32
    # out_ref: (TB, 2)    f32
    h = jnp.dot(x_ref[...], w1x_ref[...], preferred_element_type=jnp.float32)
    h = h + jnp.dot(y_ref[...], w1y_ref[...], preferred_element_type=jnp.float32)
    h = h + b1_ref[...]                       # broadcast (1, 128) over batch
    h = jnp.maximum(h, 0.0)                   # ReLU (padded lanes stay 0)

    # Layer-2 matmul kept in f32: do NOT downcast the accumulator.
    o = jnp.dot(h, w2_ref[...], preferred_element_type=jnp.float32)
    o = o + b2_ref[...]                       # broadcast (1, 2)
    out_ref[...] = o.astype(out_ref.dtype)


def prepare_params(w1, b1, w2, b2, input_dim):
    """One-time wrapper-side prep: pad H 100->128, split w1 into x/y parts,
    cast the first-layer weights to bf16 (biases / layer-2 weights stay f32).

    w1: (input_dim + num_classes, 100), b1: (1, 100)
    w2: (100, 2),                       b2: (1, 2)
    """
    pad_h = HIDDEN_PAD - w1.shape[1]
    w1p = jnp.pad(w1, ((0, 0), (0, pad_h)))            # (D, 128), zero cols
    b1p = jnp.pad(b1, ((0, 0), (0, pad_h))).astype(jnp.float32)
    w2p = jnp.pad(w2, ((0, pad_h), (0, 0))).astype(jnp.float32)  # (128, 2)
    b2p = b2.astype(jnp.float32)
    w1x = w1p[:input_dim].astype(jnp.bfloat16)          # (input_dim, 128)
    w1y = w1p[input_dim:].astype(jnp.bfloat16)          # (num_classes, 128)
    return w1x, w1y, b1p, w2p, b2p


def domain_discriminator_cada(x, y, w1x, w1y, b1, w2, b2, *,
                              tb_max=8192,
                              vmem_budget_bytes=24 * 1024 * 1024):
    """x: (B, input_dim), y: (B, num_classes) -> logits (B, 2) in f32."""
    B, Dx = x.shape
    _, Dy = y.shape
    H = w1x.shape[1]          # 128 (padded)
    O = w2.shape[1]           # 2

    # Inputs in the same (bf16) dtype as the first-layer weights.
    x = x.astype(w1x.dtype)
    y = y.astype(w1y.dtype)
    in_bytes = jnp.dtype(w1x.dtype).itemsize            # 2 for bf16

    # --- VMEM-budgeted batch tile ------------------------------------------
    # Per-row footprint: double-buffered x/y input blocks + double-buffered
    # out block + f32 hidden temp (counted twice for headroom).
    bytes_per_row = 2 * (Dx + Dy) * in_bytes + 2 * O * 4 + 2 * H * 4
    tb_vmem = max(8, (vmem_budget_bytes // bytes_per_row) // 8 * 8)
    tb_cap = max(8, min(tb_max, tb_vmem))

    # --- Tiling: pad batch to 8 only; pick tile count first -----------------
    B8 = _round_up(B, 8)
    num_tiles = _cdiv(B8, tb_cap)
    if B8 >= 16:
        num_tiles = max(num_tiles, 2)        # >=2 tiles -> both TCs on v7x
    TB = _round_up(_cdiv(B8, num_tiles), 8)
    B_pad = num_tiles * TB                   # over-padding <= num_tiles*8 rows
    if B_pad != B:
        x = jnp.pad(x, ((0, B_pad - B), (0, 0)))
        y = jnp.pad(y, ((0, B_pad - B), (0, 0)))

    cost = pl.CostEstimate(
        flops=2 * B_pad * (Dx + Dy) * H + 2 * B_pad * H * O,
        transcendentals=0,
        bytes_accessed=(B_pad * (Dx + Dy) * in_bytes        # x, y streams
                        + B_pad * O * 4                      # logits
                        + (Dx + Dy) * H * in_bytes           # w1 (bf16)
                        + H * 4 + H * O * 4 + O * 4),        # b1, w2, b2 (f32)
    )

    out = pl.pallas_call(
        _mlp_kernel,
        out_shape=jax.ShapeDtypeStruct((B_pad, O), jnp.float32),
        grid_spec=pl.GridSpec(
            grid=(num_tiles,),
            in_specs=[
                pl.BlockSpec((TB, Dx), lambda i: (i, 0)),   # x: batch-tiled
                pl.BlockSpec((TB, Dy), lambda i: (i, 0)),   # y: batch-tiled
                pl.BlockSpec((Dx, H), lambda i: (0, 0)),    # weights resident
                pl.BlockSpec((Dy, H), lambda i: (0, 0)),
                pl.BlockSpec((1, H), lambda i: (0, 0)),
                pl.BlockSpec((H, O), lambda i: (0, 0)),
                pl.BlockSpec((1, O), lambda i: (0, 0)),
            ],
            out_specs=pl.BlockSpec((TB, O), lambda i: (i, 0)),
        ),
        compiler_params=pltpu.CompilerParams(
            dimension_semantics=("parallel",),
            vmem_limit_bytes=48 * 1024 * 1024),
        cost_estimate=cost,
    )(x, y, w1x, w1y, b1, w2, b2)

    # Padded rows carry ReLU(b1)@w2 + b2 junk logits; slicing them off is
    # load-bearing — do not remove.
    return out[:B]


def init_params(key, input_dim, num_classes, hidden=HIDDEN, out=OUT):
    """Deterministic init mimicking nn.Linear default (U(-1/sqrt(fan_in), ...)).

    Weights stored as [in_features, out_features] (transposed vs. PyTorch)."""
    d_in = input_dim + num_classes
    k1, k2, k3, k4 = jax.random.split(key, 4)
    bound1 = 1.0 / jnp.sqrt(d_in)
    bound2 = 1.0 / jnp.sqrt(hidden)
    w1 = jax.random.uniform(k1, (d_in, hidden), jnp.float32, -bound1, bound1)
    b1 = jax.random.uniform(k2, (1, hidden), jnp.float32, -bound1, bound1)
    w2 = jax.random.uniform(k3, (hidden, out), jnp.float32, -bound2, bound2)
    b2 = jax.random.uniform(k4, (1, out), jnp.float32, -bound2, bound2)
    return w1, b1, w2, b2


if __name__ == "__main__":
    key = jax.random.PRNGKey(0)
    kx, ky, kp = jax.random.split(key, 3)

    batch = 16            # >= 16 so the 2-tile / dual-TC path is exercised
    input_dim = 32
    num_classes = 4

    x = jax.random.normal(kx, (batch, input_dim), jnp.float32)
    y = jax.random.normal(ky, (batch, num_classes), jnp.float32)

    w1, b1, w2, b2 = init_params(kp, input_dim, num_classes)
    w1x, w1y, b1p, w2p, b2p = prepare_params(w1, b1, w2, b2, input_dim)

    out = domain_discriminator_cada(x, y, w1x, w1y, b1p, w2p, b2p)
    out = jax.block_until_ready(out)
    assert out.shape == (batch, 2)

    # Reference in plain JAX with matching bf16 casts on inputs / layer-1
    # weights (f32 accumulation), i.e. the same arithmetic the kernel does.
    xb = x.astype(jnp.bfloat16).astype(jnp.float32)
    yb = y.astype(jnp.bfloat16).astype(jnp.float32)
    w1b = w1.astype(jnp.bfloat16).astype(jnp.float32)
    xy = jnp.concatenate([xb, yb], axis=1)
    ref = jnp.maximum(xy @ w1b + b1, 0.0) @ w2 + b2
    assert jnp.allclose(out, ref, atol=1e-4, rtol=1e-4)

    # Loose sanity check against the pure-f32 PyTorch-equivalent forward.
    xy32 = jnp.concatenate([x, y], axis=1)
    ref32 = jnp.maximum(xy32 @ w1 + b1, 0.0) @ w2 + b2
    assert jnp.allclose(out, ref32, atol=5e-2, rtol=5e-2)

    print("KERNEL_OK")
</pallas_src>

<mosaic_0001>
module attributes {stable_mosaic.version = 11 : i64} {
  func.func @_mlp_kernel(%arg0: i32, %arg1: memref<8x32xbf16, #tpu.memory_space<vmem>>, %arg2: memref<8x4xbf16, #tpu.memory_space<vmem>>, %arg3: memref<32x128xbf16, #tpu.memory_space<vmem>>, %arg4: memref<4x128xbf16, #tpu.memory_space<vmem>>, %arg5: memref<1x128xf32, #tpu.memory_space<vmem>>, %arg6: memref<128x2xf32, #tpu.memory_space<vmem>>, %arg7: memref<1x2xf32, #tpu.memory_space<vmem>>, %arg8: memref<8x2xf32, #tpu.memory_space<vmem>>) attributes {dimension_semantics = [#tpu.dimension_semantics<parallel>], iteration_bounds = array<i64: 2>, scalar_prefetch = 0 : i64, scratch_operands = 0 : i64, tpu.core_type = #tpu.core_type<tc>, window_params = [{transform_indices = @transform_0, window_bounds = array<i64: 8, 32>}, {transform_indices = @transform_1, window_bounds = array<i64: 8, 4>}, {pipeline_mode = #tpu.pipeline_mode<synchronous>, transform_indices = @transform_2, window_bounds = array<i64: 32, 128>}, {pipeline_mode = #tpu.pipeline_mode<synchronous>, transform_indices = @transform_3, window_bounds = array<i64: 4, 128>}, {pipeline_mode = #tpu.pipeline_mode<synchronous>, transform_indices = @transform_4, window_bounds = array<i64: 1, 128>}, {pipeline_mode = #tpu.pipeline_mode<synchronous>, transform_indices = @transform_5, window_bounds = array<i64: 128, 2>}, {pipeline_mode = #tpu.pipeline_mode<synchronous>, transform_indices = @transform_6, window_bounds = array<i64: 1, 2>}, {transform_indices = @transform_7, window_bounds = array<i64: 8, 2>}]} {
    %c0 = arith.constant 0 : index
    %c0_0 = arith.constant 0 : index
    %0 = vector.load %arg1[%c0, %c0_0] : memref<8x32xbf16, #tpu.memory_space<vmem>>, vector<8x32xbf16>
    %c0_1 = arith.constant 0 : index
    %c0_2 = arith.constant 0 : index
    %1 = vector.load %arg3[%c0_1, %c0_2] : memref<32x128xbf16, #tpu.memory_space<vmem>>, vector<32x128xbf16>
    %cst = arith.constant dense<0.000000e+00> : vector<8x128xf32>
    %2 = tpu.matmul %0, %1, %cst {dimension_numbers = #tpu.dot_dimension_numbers<[1], [0], [0], [1], [0, 0, 1, 1], [], []>} : vector<8x32xbf16>, vector<32x128xbf16>, vector<8x128xf32> -> vector<8x128xf32>
    %c0_3 = arith.constant 0 : index
    %c0_4 = arith.constant 0 : index
    %3 = vector.load %arg2[%c0_3, %c0_4] : memref<8x4xbf16, #tpu.memory_space<vmem>>, vector<8x4xbf16>
    %c0_5 = arith.constant 0 : index
    %c0_6 = arith.constant 0 : index
    %4 = vector.load %arg4[%c0_5, %c0_6] : memref<4x128xbf16, #tpu.memory_space<vmem>>, vector<4x128xbf16>
    %cst_7 = arith.constant dense<0.000000e+00> : vector<8x128xf32>
    %5 = tpu.matmul %3, %4, %cst_7 {dimension_numbers = #tpu.dot_dimension_numbers<[1], [0], [0], [1], [0, 0, 1, 1], [], []>} : vector<8x4xbf16>, vector<4x128xbf16>, vector<8x128xf32> -> vector<8x128xf32>
    %6 = arith.addf %2, %5 : vector<8x128xf32>
    %c0_8 = arith.constant 0 : index
    %c0_9 = arith.constant 0 : index
    %7 = vector.load %arg5[%c0_8, %c0_9] : memref<1x128xf32, #tpu.memory_space<vmem>>, vector<1x128xf32>
    %8 = vector.broadcast %7 : vector<1x128xf32> to vector<8x128xf32>
    %9 = arith.addf %6, %8 : vector<8x128xf32>
    %cst_10 = arith.constant 0.000000e+00 : f32
    %10 = vector.broadcast %cst_10 : f32 to vector<8x128xf32>
    %11 = arith.maximumf %9, %10 : vector<8x128xf32>
    %c0_11 = arith.constant 0 : index
    %c0_12 = arith.constant 0 : index
    %12 = vector.load %arg6[%c0_11, %c0_12] : memref<128x2xf32, #tpu.memory_space<vmem>>, vector<128x2xf32>
    %cst_13 = arith.constant dense<0.000000e+00> : vector<8x2xf32>
    %13 = tpu.matmul %11, %12, %cst_13 {dimension_numbers = #tpu.dot_dimension_numbers<[1], [0], [0], [1], [0, 0, 1, 1], [], []>} : vector<8x128xf32>, vector<128x2xf32>, vector<8x2xf32> -> vector<8x2xf32>
    %c0_14 = arith.constant 0 : index
    %c0_15 = arith.constant 0 : index
    %14 = vector.load %arg7[%c0_14, %c0_15] : memref<1x2xf32, #tpu.memory_space<vmem>>, vector<1x2xf32>
    %15 = vector.broadcast %14 : vector<1x2xf32> to vector<8x2xf32>
    %16 = arith.addf %13, %15 : vector<8x2xf32>
    %c0_16 = arith.constant 0 : index
    %c0_17 = arith.constant 0 : index
    %17 = vector.load %arg8[%c0_16, %c0_17] : memref<8x2xf32, #tpu.memory_space<vmem>>, vector<8x2xf32>
    tpu.vector_store %arg8[%c0_16, %c0_17], %16 {strides = array<i32>} : memref<8x2xf32, #tpu.memory_space<vmem>>, vector<8x2xf32>,
    return
  }
  func.func @transform_0(%arg0: i32) -> (i32, i32) {
    %c0_i32 = arith.constant 0 : i32
    %c0_i32_0 = arith.constant 0 : i32
    return %arg0, %c0_i32 : i32, i32
  }
  func.func @transform_1(%arg0: i32) -> (i32, i32) {
    %c0_i32 = arith.constant 0 : i32
    %c0_i32_0 = arith.constant 0 : i32
    return %arg0, %c0_i32 : i32, i32
  }
  func.func @transform_2(%arg0: i32) -> (i32, i32) {
    %c0_i32 = arith.constant 0 : i32
    %c0_i32_0 = arith.constant 0 : i32
    %c0_i32_1 = arith.constant 0 : i32
    return %c0_i32, %c0_i32_0 : i32, i32
  }
  func.func @transform_3(%arg0: i32) -> (i32, i32) {
    %c0_i32 = arith.constant 0 : i32
    %c0_i32_0 = arith.constant 0 : i32
    %c0_i32_1 = arith.constant 0 : i32
    return %c0_i32, %c0_i32_0 : i32, i32
  }
  func.func @transform_4(%arg0: i32) -> (i32, i32) {
    %c0_i32 = arith.constant 0 : i32
    %c0_i32_0 = arith.constant 0 : i32
    %c0_i32_1 = arith.constant 0 : i32
    return %c0_i32, %c0_i32_0 : i32, i32
  }
  func.func @transform_5(%arg0: i32) -> (i32, i32) {
    %c0_i32 = arith.constant 0 : i32
    %c0_i32_0 = arith.constant 0 : i32
    %c0_i32_1 = arith.constant 0 : i32
    return %c0_i32, %c0_i32_0 : i32, i32
  }
  func.func @transform_6(%arg0: i32) -> (i32, i32) {
    %c0_i32 = arith.constant 0 : i32
    %c0_i32_0 = arith.constant 0 : i32
    %c0_i32_1 = arith.constant 0 : i32
    return %c0_i32, %c0_i32_0 : i32, i32
  }
  func.func @transform_7(%arg0: i32) -> (i32, i32) {
    %c0_i32 = arith.constant 0 : i32
    %c0_i32_0 = arith.constant 0 : i32
    return %arg0, %c0_i32 : i32, i32
  }
}

</mosaic_0001>

<llo_original>
// kernel: tpu_custom_call.1
$region0: #{tpu_custom_call.1}
  #allocation0 [shape = 'u32[]', space=smem, size = 0x4, offset = 0x4, fixed_abs, tag = 'smem constant byte address 0x4 - core index']
  #allocation1 [shape = 'u32[144,128]{1,0:T(1,128)}', space=vmem, size = 0x12000, scoped, tag = 'internal scratch']
  %s0 = inlined_call_operand.vmem [shape: bf16[16,32], index: 0, kind: input, shape index: {}]
  %s1 = inlined_call_operand.vmem [shape: bf16[16,4], index: 1, kind: input, shape index: {}]
  %s2 = inlined_call_operand.vmem [shape: bf16[32,128], index: 2, kind: input, shape index: {}]
  %s3 = inlined_call_operand.vmem [shape: bf16[4,128], index: 3, kind: input, shape index: {}]
  %s4 = inlined_call_operand.vmem [shape: f32[1,128], index: 4, kind: input, shape index: {}]
  %s5 = inlined_call_operand.vmem [shape: f32[128,2], index: 5, kind: input, shape index: {}]
  %s6 = inlined_call_operand.vmem [shape: f32[1,2], index: 6, kind: input, shape index: {}]
  %s7 = inlined_call_operand.vmem [shape: f32[16,2], index: 7, kind: output, shape index: {}]
  %s8 = sld [smem:[#allocation0]]
  $region61: #{tpu_custom_call.1} parent=0
    _
  %s10 = ssub.s32 1, %s8
  %s11 = scalar_select 0, %s10, %s8
  loop: start=0, step=1, limit=4
  $region2: #{tpu_custom_call.1} parent=0 // loop_pre_header
    _
  $region3: #{tpu_custom_call.1} parent=0 // loop_header
    %s13 = sphi 0, %s17
    %p14 = scmp.ge.s32.totalorder %s13, 4
    %s23 = sphi 0, %s25
    %s26 = sphi 0, %s23
    %s27 = sphi 0, %s26
    %s43 = sphi 0, %s27
    %s49 = sphi 0, %s51
    %s52 = sphi 0, %s49
    %s53 = sphi 0, %s52
    %s69 = sphi 0, %s53
    %s73 = sphi 0, %s73
    %s75 = sphi 0, %s73
    %s76 = sphi 0, %s75
    %s90 = sphi 0, %s76
    %s94 = sphi 0, %s94
    %s96 = sphi 0, %s94
    %s97 = sphi 0, %s96
    %s111 = sphi 0, %s97
    %s115 = sphi 0, %s115
    %s117 = sphi 0, %s115
    %s118 = sphi 0, %s117
    %s132 = sphi 0, %s118
    %s136 = sphi 0, %s136
    %s138 = sphi 0, %s136
    %s139 = sphi 0, %s138
    %s153 = sphi 0, %s139
    %s157 = sphi 0, %s157
    %s159 = sphi 0, %s157
    %s160 = sphi 0, %s159
    %s174 = sphi 0, %s160
    %s180 = sphi 0, %s182
    %s183 = sphi 0, %s180
    %s184 = sphi 0, %s183
    %s200 = sphi 0, %s184
  $region4: #{tpu_custom_call.1} parent=0 // loop_header_branch
    %16 = sbr.rel (%p14) target = $region8
  $region5: #{tpu_custom_call.1} parent=0 // loop_body
    %s18 = ssub.s32 %s13, 1
    %s19 = ssub.s32 %s13, 2
    %s20 = sadd.s32 %s13, 1
    %s21 = ssub.s32 %s13, %s20
    %p22 = scmp.eq.s32.totalorder %s21, 0
    %s24 = sadd.s32 %s23, 1
    %s25 = scalar_select %p22, %s23, %s24
    %p28 = pneg %p22
    %p29 = scmp.eq.s32.totalorder %s13, 1
    %p30 = por %p28, %p29
    %p31 = scmp.ne.s32.totalorder %s23, %s26
    %p32 = scmp.eq.s32.totalorder %s13, 0
    %p33 = por %p31, %p32
    %p34 = scmp.ne.s32.totalorder %s23, %s26
    %p35 = scmp.eq.s32.totalorder %s18, 1
    %p36 = por %p34, %p35
    %p37 = scmp.ne.s32.totalorder %s26, %s27
    %p38 = scmp.eq.s32.totalorder %s18, 0
    %p39 = por %p37, %p38
    %p40 = scmp.ne.s32.totalorder %s26, %s27
    %p41 = scmp.eq.s32.totalorder %s19, 1
    %p42 = por %p40, %p41
    %p44 = scmp.ne.s32.totalorder %s27, %s43
    %p45 = scmp.eq.s32.totalorder %s19, 0
    %p46 = por %p44, %p45
    %s47 = ssub.s32 %s13, %s20
    %p48 = scmp.eq.s32.totalorder %s47, 0
    %s50 = sadd.s32 %s49, 1
    %s51 = scalar_select %p48, %s49, %s50
    %p54 = pneg %p48
    %p55 = scmp.eq.s32.totalorder %s13, 1
    %p56 = por %p54, %p55
    %p57 = scmp.ne.s32.totalorder %s49, %s52
    %p58 = scmp.eq.s32.totalorder %s13, 0
    %p59 = por %p57, %p58
    %p60 = scmp.ne.s32.totalorder %s49, %s52
    %p61 = scmp.eq.s32.totalorder %s18, 1
    %p62 = por %p60, %p61
    %p63 = scmp.ne.s32.totalorder %s52, %s53
    %p64 = scmp.eq.s32.totalorder %s18, 0
    %p65 = por %p63, %p64
    %p66 = scmp.ne.s32.totalorder %s52, %s53
    %p67 = scmp.eq.s32.totalorder %s19, 1
    %p68 = por %p66, %p67
    %p70 = scmp.ne.s32.totalorder %s53, %s69
    %p71 = scmp.eq.s32.totalorder %s19, 0
    %p72 = por %p70, %p71
    %s74 = sadd.s32 %s73, 1
    %p77 = scmp.eq.s32.totalorder %s13, 1
    %p78 = scmp.ne.s32.totalorder %s73, %s75
    %p79 = scmp.eq.s32.totalorder %s13, 0
    %p80 = por %p78, %p79
    %p81 = scmp.ne.s32.totalorder %s73, %s75
    %p82 = scmp.eq.s32.totalorder %s18, 1
    %p83 = por %p81, %p82
    %p84 = scmp.ne.s32.totalorder %s75, %s76
    %p85 = scmp.eq.s32.totalorder %s18, 0
    %p86 = por %p84, %p85
    %p87 = scmp.ne.s32.totalorder %s75, %s76
    %p88 = scmp.eq.s32.totalorder %s19, 1
    %p89 = por %p87, %p88
    %p91 = scmp.ne.s32.totalorder %s76, %s90
    %p92 = scmp.eq.s32.totalorder %s19, 0
    %p93 = por %p91, %p92
    %s95 = sadd.s32 %s94, 1
    %p98 = scmp.eq.s32.totalorder %s13, 1
    %p99 = scmp.ne.s32.totalorder %s94, %s96
    %p100 = scmp.eq.s32.totalorder %s13, 0
    %p101 = por %p99, %p100
    %p102 = scmp.ne.s32.totalorder %s94, %s96
    %p103 = scmp.eq.s32.totalorder %s18, 1
    %p104 = por %p102, %p103
    %p105 = scmp.ne.s32.totalorder %s96, %s97
    %p106 = scmp.eq.s32.totalorder %s18, 0
    %p107 = por %p105, %p106
    %p108 = scmp.ne.s32.totalorder %s96, %s97
    %p109 = scmp.eq.s32.totalorder %s19, 1
    %p110 = por %p108, %p109
    %p112 = scmp.ne.s32.totalorder %s97, %s111
    %p113 = scmp.eq.s32.totalorder %s19, 0
    %p114 = por %p112, %p113
    %s116 = sadd.s32 %s115, 1
    %p119 = scmp.eq.s32.totalorder %s13, 1
    %p120 = scmp.ne.s32.totalorder %s115, %s117
    %p121 = scmp.eq.s32.totalorder %s13, 0
    %p122 = por %p120, %p121
    %p123 = scmp.ne.s32.totalorder %s115, %s117
    %p124 = scmp.eq.s32.totalorder %s18, 1
    %p125 = por %p123, %p124
    %p126 = scmp.ne.s32.totalorder %s117, %s118
    %p127 = scmp.eq.s32.totalorder %s18, 0
    %p128 = por %p126, %p127
    %p129 = scmp.ne.s32.totalorder %s117, %s118
    %p130 = scmp.eq.s32.totalorder %s19, 1
    %p131 = por %p129, %p130
    %p133 = scmp.ne.s32.totalorder %s118, %s132
    %p134 = scmp.eq.s32.totalorder %s19, 0
    %p135 = por %p133, %p134
    %s137 = sadd.s32 %s136, 1
    %p140 = scmp.eq.s32.totalorder %s13, 1
    %p141 = scmp.ne.s32.totalorder %s136, %s138
    %p142 = scmp.eq.s32.totalorder %s13, 0
    %p143 = por %p141, %p142
    %p144 = scmp.ne.s32.totalorder %s136, %s138
    %p145 = scmp.eq.s32.totalorder %s18, 1
    %p146 = por %p144, %p145
    %p147 = scmp.ne.s32.totalorder %s138, %s139
    %p148 = scmp.eq.s32.totalorder %s18, 0
    %p149 = por %p147, %p148
    %p150 = scmp.ne.s32.totalorder %s138, %s139
    %p151 = scmp.eq.s32.totalorder %s19, 1
    %p152 = por %p150, %p151
    %p154 = scmp.ne.s32.totalorder %s139, %s153
    %p155 = scmp.eq.s32.totalorder %s19, 0
    %p156 = por %p154, %p155
    %s158 = sadd.s32 %s157, 1
    %p161 = scmp.eq.s32.totalorder %s13, 1
    %p162 = scmp.ne.s32.totalorder %s157, %s159
    %p163 = scmp.eq.s32.totalorder %s13, 0
    %p164 = por %p162, %p163
    %p165 = scmp.ne.s32.totalorder %s157, %s159
    %p166 = scmp.eq.s32.totalorder %s18, 1
    %p167 = por %p165, %p166
    %p168 = scmp.ne.s32.totalorder %s159, %s160
    %p169 = scmp.eq.s32.totalorder %s18, 0
    %p170 = por %p168, %p169
    %p171 = scmp.ne.s32.totalorder %s159, %s160
    %p172 = scmp.eq.s32.totalorder %s19, 1
    %p173 = por %p171, %p172
    %p175 = scmp.ne.s32.totalorder %s160, %s174
    %p176 = scmp.eq.s32.totalorder %s19, 0
    %p177 = por %p175, %p176
    %s178 = ssub.s32 %s13, %s20
    %p179 = scmp.eq.s32.totalorder %s178, 0
    %s181 = sadd.s32 %s180, 1
    %s182 = scalar_select %p179, %s180, %s181
    %p185 = pneg %p179
    %p186 = scmp.eq.s32.totalorder %s13, 1
    %p187 = por %p185, %p186
    %p188 = scmp.ne.s32.totalorder %s180, %s183
    %p189 = scmp.eq.s32.totalorder %s13, 0
    %p190 = por %p188, %p189
    %p191 = scmp.ne.s32.totalorder %s180, %s183
    %p192 = scmp.eq.s32.totalorder %s18, 1
    %p193 = por %p191, %p192
    %p194 = scmp.ne.s32.totalorder %s183, %s184
    %p195 = scmp.eq.s32.totalorder %s18, 0
    %p196 = por %p194, %p195
    %p197 = scmp.ne.s32.totalorder %s183, %s184
    %p198 = scmp.eq.s32.totalorder %s19, 1
    %p199 = por %p197, %p198
    %p201 = scmp.ne.s32.totalorder %s184, %s200
    %p202 = scmp.eq.s32.totalorder %s19, 0
    %p203 = por %p201, %p202
    %p204 = scmp.le.s32.totalorder 1, %s13
    %p205 = scmp.lt.s32.totalorder %s13, 3
    %p206 = pnand %p204, %p205
    %p207 = pneg %p206
    // Predicated region
    $region9: #{tpu_custom_call.1} parent=5 // pred_check
      _
    $region10: #{tpu_custom_call.1} parent=5 // pred_check_branch
      %209 = sbr.rel (%p206) target = $region12
    $region11: #{tpu_custom_call.1} parent=5 // pred_region
      %s210 = ssub.s32 %s13, 1
      // Predicated region
      $region13: #{tpu_custom_call.1} parent=11 // pred_check
        %p211 = pneg %p86
      $region14: #{tpu_custom_call.1} parent=11 // pred_check_branch
        %213 = sbr.rel (%p211) target = $region16
      $region15: #{tpu_custom_call.1} parent=11 // pred_region
        _
      $region16: #{tpu_custom_call.1} parent=11 // pred_fallthru
        _
      // Predicated region
      $region17: #{tpu_custom_call.1} parent=11 // pred_check
        %p214 = pneg %p107
      $region18: #{tpu_custom_call.1} parent=11 // pred_check_branch
        %216 = sbr.rel (%p214) target = $region20
      $region19: #{tpu_custom_call.1} parent=11 // pred_region
        _
      $region20: #{tpu_custom_call.1} parent=11 // pred_fallthru
        _
      // Predicated region
      $region21: #{tpu_custom_call.1} parent=11 // pred_check
        %p217 = pneg %p128
      $region22: #{tpu_custom_call.1} parent=11 // pred_check_branch
        %219 = sbr.rel (%p217) target = $region24
      $region23: #{tpu_custom_call.1} parent=11 // pred_region
        _
      $region24: #{tpu_custom_call.1} parent=11 // pred_fallthru
        _
      // Predicated region
      $region25: #{tpu_custom_call.1} parent=11 // pred_check
        %p220 = pneg %p149
      $region26: #{tpu_custom_call.1} parent=11 // pred_check_branch
        %222 = sbr.rel (%p220) target = $region28
      $region27: #{tpu_custom_call.1} parent=11 // pred_region
        _
      $region28: #{tpu_custom_call.1} parent=11 // pred_fallthru
        _
      // Predicated region
      $region29: #{tpu_custom_call.1} parent=11 // pred_check
        %p223 = pneg %p170
      $region30: #{tpu_custom_call.1} parent=11 // pred_check_branch
        %225 = sbr.rel (%p223) target = $region32
      $region31: #{tpu_custom_call.1} parent=11 // pred_region
        _
      $region32: #{tpu_custom_call.1} parent=11 // pred_fallthru
        _
    $region12: #{tpu_custom_call.1} parent=5 // pred_fallthru
      _
    %p226 = scmp.lt.s32.totalorder %s13, 2
    // Predicated region
    $region33: #{tpu_custom_call.1} parent=5 // pred_check
      %p227 = pneg %p226
    $region34: #{tpu_custom_call.1} parent=5 // pred_check_branch
      %229 = sbr.rel (%p227) target = $region36
    $region35: #{tpu_custom_call.1} parent=5 // pred_region
      // Predicated region
      $region37: #{tpu_custom_call.1} parent=35 // pred_check
        %p230 = pneg %p33
      $region38: #{tpu_custom_call.1} parent=35 // pred_check_branch
        %232 = sbr.rel (%p230) target = $region40
      $region39: #{tpu_custom_call.1} parent=35 // pred_region
        %p233 = scmp.lt.s32.totalorder %s13, 1
        %s234 = scalar_select %p233, %s13, 1
        %s235 = smul.addr %s234, 4
        %s236 = scalar_lea.vmem %s0, %s235
      $region40: #{tpu_custom_call.1} parent=35 // pred_fallthru
        _
      // Predicated region
      $region41: #{tpu_custom_call.1} parent=35 // pred_check
        %p237 = pneg %p59
      $region42: #{tpu_custom_call.1} parent=35 // pred_check_branch
        %239 = sbr.rel (%p237) target = $region44
      $region43: #{tpu_custom_call.1} parent=35 // pred_region
        %p240 = scmp.lt.s32.totalorder %s13, 1
        %s241 = scalar_select %p240, %s13, 1
        %s242 = smul.addr %s241, 4
        %s243 = scalar_lea.vmem %s1, %s242
      $region44: #{tpu_custom_call.1} parent=35 // pred_fallthru
        _
    $region36: #{tpu_custom_call.1} parent=5 // pred_fallthru
      _
    %p244 = scmp.le.s32.totalorder 1, %s13
    %p245 = scmp.lt.s32.totalorder %s13, 3
    %p246 = pnand %p244, %p245
    %p247 = pneg %p246
    // Predicated region
    $region45: #{tpu_custom_call.1} parent=5 // pred_check
      _
    $region46: #{tpu_custom_call.1} parent=5 // pred_check_branch
      %249 = sbr.rel (%p246) target = $region48
    $region47: #{tpu_custom_call.1} parent=5 // pred_region
      %s250 = ssub.s32 %s13, 1
      %p251 = scmp.lt.s32.totalorder %s18, 1
      %s252 = scalar_select %p251, %s18, 1
      %s253 = smul.addr %s252, 4
      %s254 = scalar_lea.vmem %s0, %s253
      %p255 = pneg %p39
      %p256 = pneg %p36
      %p257 = scmp.lt.s32.totalorder %s18, 1
      %s258 = scalar_select %p257, %s18, 1
      %s259 = smul.addr %s258, 4
      %s260 = scalar_lea.vmem %s1, %s259
      %p261 = pneg %p65
      %p262 = pneg %p62
      %p263 = pneg %p86
      %p264 = pneg %p83
      %p265 = pneg %p107
      %p266 = pneg %p104
      %p267 = pneg %p128
      %p268 = pneg %p125
      %p269 = pneg %p149
      %p270 = pneg %p146
      %p271 = pneg %p170
      %p272 = pneg %p167
      %p273 = pneg %p196
      %p274 = pneg %p193
      %p275 = scmp.lt.s32.totalorder %s18, 1
      %s276 = scalar_select %p275, %s18, 1
      %s277 = smul.addr %s276, 8
      %s278 = scalar_lea.vmem %s7, %s277
      %p279 = scmp.lt.s32.totalorder %s18, 1
      %s280 = scalar_select %p279, %s18, 1
      %s281 = smul.addr %s280, 4
      %s282 = scalar_lea.vmem %s0, %s281
      %p283 = scmp.lt.s32.totalorder %s18, 1
      %s284 = scalar_select %p283, %s18, 1
      %s285 = smul.addr %s284, 4
      %s286 = scalar_lea.vmem %s1, %s285
      %p287 = scmp.lt.s32.totalorder %s18, 1
      %s288 = scalar_select %p287, %s18, 1
      %s289 = smul.addr %s288, 8
      %s290 = scalar_lea.vmem %s7, %s289
      %v292 = vld [vmem:[%s282] sm:$0xf]
      %v293 = vld [vmem:[%s2] sm:$0xf]
      %v294 = vld [vmem:[%s2 + $0x4] sm:$0xf]
      %v295 = vld [vmem:[%s2 + $0x8] sm:$0xf]
      %v296 = vld [vmem:[%s2 + $0xc] sm:$0xf]
      %v297 = vld [vmem:[%s286] sm:$0xf]
      %v298 = vld [vmem:[%s3] sm:$0x3]
      %vm299 = vcmask 31744
      %v301 = vsel %vm299, %v297, 0
      %vm303 = vcmask 1041408
      %v305 = vsel %vm303, %v298, 0
      %307 = vmatprep.subr.bf16.mxu0 0
      %308 = vmatpush1.bf16.msra.mxu0 %v305
      %309 = vmatprep.subr.bf16.mxu0 0
      %310 = vmatpush1.bf16.msra.mxu0 0
      %311 = vmatprep.subr.bf16.mxu0 0
      %312 = vmatpush1.bf16.msra.mxu0 0
      %313 = vmatprep.subr.bf16.mxu0 0
      %314 = vmatpush1.bf16.msra.mxu0 0
      %315 = vmatprep.subr.bf16.mxu0 0
      %316 = vmatpush1.bf16.msra.mxu0 0
      %317 = vmatprep.subr.bf16.mxu0 0
      %318 = vmatpush1.bf16.msra.mxu0 0
      %319 = vmatprep.subr.bf16.mxu0 0
      %320 = vmatpush1.bf16.msra.mxu0 0
      %321 = vmatprep.subr.bf16.mxu0 0
      %322 = vmatpush1.bf16.msra.mxu0 0
      %323 = vmatprep.subr.bf16.mxu0 0
      %324 = vmatpush1.bf16.msra.mxu0 0
      %325 = vmatprep.subr.bf16.mxu0 0
      %326 = vmatpush1.bf16.msra.mxu0 0
      %327 = vmatprep.subr.bf16.mxu0 0
      %328 = vmatpush1.bf16.msra.mxu0 0
      %329 = vmatprep.subr.bf16.mxu0 0
      %330 = vmatpush1.bf16.msra.mxu0 0
      %331 = vmatprep.subr.bf16.mxu0 0
      %332 = vmatpush1.bf16.msra.mxu0 0
      %333 = vmatprep.subr.bf16.mxu0 0
      %334 = vmatpush1.bf16.msra.mxu0 0
      %335 = vmatprep.subr.bf16.mxu0 0
      %336 = vmatpush1.bf16.msra.mxu0 0
      %337 = vmatprep.subr.bf16.mxu0 0
      %338 = vmatpush1.bf16.msra.mxu0 0
      %339 = vmatprep.mubr.bf16.mxu0 0
      %340 = vmatmul.mubr.bf16.gmra.mrb[0].mxu0 %v301
      %v341 = vpop.f32.mrb[0].mxu0
      %v342 = vadd.f32 0.0, %v341
      %v343 = vpop.f32.mrb[0].mxu0
      %v344 = vpop.f32.mrb[0].mxu0
      %v345 = vpop.f32.mrb[0].mxu0
      %346 = vdwg.mxu0
      %v351 = vunpack.c.l.b16 %v293
      %v352 = vunpack.c.l.b16 %v294
      %v353 = vunpack.c.l.b16 %v295
      %v354 = vunpack.c.l.b16 %v296
      %v355 = vpack.c.b16 %v352, %v351
      %v356 = vpack.c.b16 %v354, %v353
      %vm359 = vcmask 261120
      %v361 = vsel %vm359, %v292, 0
      %363 = vmatprep.subr.bf16.mxu0 0
      %364 = vmatpush1.bf16.msra.mxu0 %v355
      %365 = vmatprep.subr.bf16.mxu0 0
      %366 = vmatpush1.bf16.msra.mxu0 %v356
      %367 = vmatprep.subr.bf16.mxu0 0
      %368 = vmatpush1.bf16.msra.mxu0 0
      %369 = vmatprep.subr.bf16.mxu0 0
      %370 = vmatpush1.bf16.msra.mxu0 0
      %371 = vmatprep.subr.bf16.mxu0 0
      %372 = vmatpush1.bf16.msra.mxu0 0
      %373 = vmatprep.subr.bf16.mxu0 0
      %374 = vmatpush1.bf16.msra.mxu0 0
      %375 = vmatprep.subr.bf16.mxu0 0
      %376 = vmatpush1.bf16.msra.mxu0 0
      %377 = vmatprep.subr.bf16.mxu0 0
      %378 = vmatpush1.bf16.msra.mxu0 0
      %379 = vmatprep.subr.bf16.mxu0 0
      %380 = vmatpush1.bf16.msra.mxu0 0
      %381 = vmatprep.subr.bf16.mxu0 0
      %382 = vmatpush1.bf16.msra.mxu0 0
      %383 = vmatprep.subr.bf16.mxu0 0
      %384 = vmatpush1.bf16.msra.mxu0 0
      %385 = vmatprep.subr.bf16.mxu0 0
      %386 = vmatpush1.bf16.msra.mxu0 0
      %387 = vmatprep.subr.bf16.mxu0 0
      %388 = vmatpush1.bf16.msra.mxu0 0
      %389 = vmatprep.subr.bf16.mxu0 0
      %390 = vmatpush1.bf16.msra.mxu0 0
      %391 = vmatprep.subr.bf16.mxu0 0
      %392 = vmatpush1.bf16.msra.mxu0 0
      %393 = vmatprep.subr.bf16.mxu0 0
      %394 = vmatpush1.bf16.msra.mxu0 0
      %395 = vmatprep.mubr.bf16.mxu0 0
      %396 = vmatmul.mubr.bf16.gmra.mrb[0].mxu0 %v361
      %v397 = vpop.f32.mrb[0].mxu0
      %v398 = vadd.f32 %v342, %v397
      %v399 = vpop.f32.mrb[0].mxu0
      %v400 = vpop.f32.mrb[0].mxu0
      %v401 = vpop.f32.mrb[0].mxu0
      %402 = vdwg.mxu0
      %v403 = vld [vmem:[%s4] sm:$0x1]
      %v405 = vlaneseq
      %v406 = vshrl.u32 %v405, 7
      %v407 = vsub.s32 0, %v406
      %v408 = vrot.slane %v403, %v407
      %v410 = vadd.f32 %v398, %v408
      %v411 = vmax.f32 %v410, 0.0
      %v412 = vld [vmem:[%s5] sm:$0xff]
      %v413 = vld [vmem:[%s5 + $0x8] sm:$0xff]
      %v414 = vld [vmem:[%s5 + $0x10] sm:$0xff]
      %v415 = vld [vmem:[%s5 + $0x18] sm:$0xff]
      %v416 = vld [vmem:[%s5 + $0x20] sm:$0xff]
      %v417 = vld [vmem:[%s5 + $0x28] sm:$0xff]
      %v418 = vld [vmem:[%s5 + $0x30] sm:$0xff]
      %v419 = vld [vmem:[%s5 + $0x38] sm:$0xff]
      %v420 = vld [vmem:[%s5 + $0x40] sm:$0xff]
      %v421 = vld [vmem:[%s5 + $0x48] sm:$0xff]
      %v422 = vld [vmem:[%s5 + $0x50] sm:$0xff]
      %v423 = vld [vmem:[%s5 + $0x58] sm:$0xff]
      %v424 = vld [vmem:[%s5 + $0x60] sm:$0xff]
      %v425 = vld [vmem:[%s5 + $0x68] sm:$0xff]
      %v426 = vld [vmem:[%s5 + $0x70] sm:$0xff]
      %v427 = vld [vmem:[%s5 + $0x78] sm:$0xff]
      %v428 = vld [vmem:[%s6] sm:$0x1]
      %v430 = vlaneseq
      %v431 = vshrl.u32 %v430, 7
      %v432 = vsub.s32 0, %v431
      %v433 = vrot.slane %v428, %v432
      %435 = vmatprep.subr.mxu0 0.0
      %436 = vmatpush1.msra.mxu0 %v412
      %437 = vmatprep.subr.mxu0 0.0
      %438 = vmatpush1.msra.mxu0 %v413
      %439 = vmatprep.subr.mxu0 0.0
      %440 = vmatpush1.msra.mxu0 %v414
      %441 = vmatprep.subr.mxu0 0.0
      %442 = vmatpush1.msra.mxu0 %v415
      %443 = vmatprep.subr.mxu0 0.0
      %444 = vmatpush1.msra.mxu0 %v416
      %445 = vmatprep.subr.mxu0 0.0
      %446 = vmatpush1.msra.mxu0 %v417
      %447 = vmatprep.subr.mxu0 0.0
      %448 = vmatpush1.msra.mxu0 %v418
      %449 = vmatprep.subr.mxu0 0.0
      %450 = vmatpush1.msra.mxu0 %v419
      %451 = vmatprep.subr.mxu0 0.0
      %452 = vmatpush1.msra.mxu0 %v420
      %453 = vmatprep.subr.mxu0 0.0
      %454 = vmatpush1.msra.mxu0 %v421
      %455 = vmatprep.subr.mxu0 0.0
      %456 = vmatpush1.msra.mxu0 %v422
      %457 = vmatprep.subr.mxu0 0.0
      %458 = vmatpush1.msra.mxu0 %v423
      %459 = vmatprep.subr.mxu0 0.0
      %460 = vmatpush1.msra.mxu0 %v424
      %461 = vmatprep.subr.mxu0 0.0
      %462 = vmatpush1.msra.mxu0 %v425
      %463 = vmatprep.subr.mxu0 0.0
      %464 = vmatpush1.msra.mxu0 %v426
      %465 = vmatprep.subr.mxu0 0.0
      %466 = vmatpush1.msra.mxu0 %v427
      %467 = vmatprep.subr.mxu0 0.0
      %468 = vmatpush1.msra.mxu0 0.0
      %469 = vmatprep.subr.mxu0 0.0
      %470 = vmatpush1.msra.mxu0 0.0
      %471 = vmatprep.subr.mxu0 0.0
      %472 = vmatpush1.msra.mxu0 0.0
      %473 = vmatprep.subr.mxu0 0.0
      %474 = vmatpush1.msra.mxu0 0.0
      %475 = vmatprep.subr.mxu0 0.0
      %476 = vmatpush1.msra.mxu0 0.0
      %477 = vmatprep.subr.mxu0 0.0
      %478 = vmatpush1.msra.mxu0 0.0
      %479 = vmatprep.subr.mxu0 0.0
      %480 = vmatpush1.msra.mxu0 0.0
      %481 = vmatprep.subr.mxu0 0.0
      %482 = vmatpush1.msra.mxu0 0.0
      %483 = vmatprep.subr.mxu0 0.0
      %484 = vmatpush1.msra.mxu0 0.0
      %485 = vmatprep.subr.mxu0 0.0
      %486 = vmatpush1.msra.mxu0 0.0
      %487 = vmatprep.subr.mxu0 0.0
      %488 = vmatpush1.msra.mxu0 0.0
      %489 = vmatprep.subr.mxu0 0.0
      %490 = vmatpush1.msra.mxu0 0.0
      %491 = vmatprep.subr.mxu0 0.0
      %492 = vmatpush1.msra.mxu0 0.0
      %493 = vmatprep.subr.mxu0 0.0
      %494 = vmatpush1.msra.mxu0 0.0
      %495 = vmatprep.subr.mxu0 0.0
      %496 = vmatpush1.msra.mxu0 0.0
      %497 = vmatprep.subr.mxu0 0.0
      %498 = vmatpush1.msra.mxu0 0.0
      %499 = vmatprep.mubr.f32.mxu0 0.0
      %500 = vmatmul.mubr.f32.gmra.mrb[0].mxu0 %v411
      %v501 = vpop.f32.mrb[0].mxu0
      %v502 = vadd.f32 %v433, %v501
      %v503 = vpop.f32.mrb[0].mxu0
      %504 = vdwg.mxu0
      %vm505 = vcmask 15360
      %506 = vst.msk [vmem:[%s290] sm:$0xff] %vm505, %v502
      %p507 = scmp.lt.s32.totalorder %s18, 1
      %s508 = scalar_select %p507, %s18, 1
      %s509 = smul.addr %s508, 8
      %s510 = scalar_lea.vmem %s7, %s509
      // Predicated region
      $region49: #{tpu_custom_call.1} parent=47 // pred_check
        %p511 = pneg %p193
      $region50: #{tpu_custom_call.1} parent=47 // pred_check_branch
        %513 = sbr.rel (%p511) target = $region52
      $region51: #{tpu_custom_call.1} parent=47 // pred_region
        _
      $region52: #{tpu_custom_call.1} parent=47 // pred_fallthru
        _
    $region48: #{tpu_custom_call.1} parent=5 // pred_fallthru
      _
    %p514 = scmp.le.s32.totalorder 2, %s13
    // Predicated region
    $region53: #{tpu_custom_call.1} parent=5 // pred_check
      %p515 = pneg %p514
    $region54: #{tpu_custom_call.1} parent=5 // pred_check_branch
      %517 = sbr.rel (%p515) target = $region56
    $region55: #{tpu_custom_call.1} parent=5 // pred_region
      %s518 = ssub.s32 %s13, 2
      // Predicated region
      $region57: #{tpu_custom_call.1} parent=55 // pred_check
        %p519 = pneg %p199
      $region58: #{tpu_custom_call.1} parent=55 // pred_check_branch
        %521 = sbr.rel (%p519) target = $region60
      $region59: #{tpu_custom_call.1} parent=55 // pred_region
        %p522 = scmp.lt.s32.totalorder %s19, 1
        %s523 = scalar_select %p522, %s19, 1
        %s524 = smul.addr %s523, 8
        %s525 = scalar_lea.vmem %s7, %s524
      $region60: #{tpu_custom_call.1} parent=55 // pred_fallthru
        _
    $region56: #{tpu_custom_call.1} parent=5 // pred_fallthru
      _
  $region6: #{tpu_custom_call.1} parent=0 // loop_footer
    %s17 = sadd.s32 1, %s13
  $region7: #{tpu_custom_call.1} parent=0 // loop_footer_branch
    %12 = sbr.rel target = $region3
  $region8: #{tpu_custom_call.1} parent=0 // loop_exit
    _

</llo_original>
